<compile_context>
chip_gen: v6e
topology: v6e:2x2x1
jax: 0.10.0
libtpu: 0.0.40
codegen_flags: <defaults>
</compile_context>

<pallas_src>
import math
import functools

import numpy as np
import jax
import jax.numpy as jnp
from jax.experimental import pallas as pl
from jax.experimental.pallas import tpu as pltpu


# ----------------------------------------------------------------------------
# Buffer construction: vectorized replica of the reference __init__ loop
# (same math, including the column-1 cos bug).  Init-time only.
# ----------------------------------------------------------------------------
def build_pe(max_seq_len, d_model):
    pos = np.arange(max_seq_len, dtype=np.float64)[:, None]          # (S, 1)
    i = np.arange(d_model, dtype=np.float64)[None, :]                # (1, D)
    angles = pos / np.power(10000.0, 2.0 * i / d_model)              # (S, D)
    even_mask = (np.arange(d_model) % 2 == 0)[None, :]
    pe = np.where(even_mask, np.sin(angles), 0.0)                    # even cols: sin
    odd_is = np.arange(d_model)[np.arange(d_model) % 2 == 1]
    if odd_is.size > 0:
        # Reference bug kept as-is: every odd i overwrites column 1, so the final
        # value is the cos term of the LAST odd i.
        last_odd = int(odd_is[-1])
        pe[:, 1] = np.cos(pos[:, 0] / 10000.0 ** (2.0 * last_odd / d_model))
    pe = pe.astype(np.float32)
    # unsqueeze(0).transpose(0, 1) -> (max_seq_len, 1, d_model)
    return jnp.asarray(pe[:, None, :])


# ----------------------------------------------------------------------------
# Kernel: fused  out = x * sqrt(d_model) + pe  on a (rows=S, lanes=B*D) view.
# ----------------------------------------------------------------------------
def _posenc_kernel(x_ref, pe_ref, o_ref, *, scale, batch):
    # x_ref / o_ref: (ts, B*D);  pe_ref: (ts, D)
    pe = pe_ref[...]
    if batch > 1:
        # Broadcast pe over batch along the lane axis (minor-dim concat of
        # identical copies); this work rides on VPU/XLU slack in a mem-bound kernel.
        pe = jnp.concatenate([pe] * batch, axis=-1)          # (ts, B*D)
    o_ref[...] = (x_ref[...] * scale + pe).astype(o_ref.dtype)


def _vmem_capacity_bytes():
    try:
        cap = getattr(pltpu.get_tpu_info(), "vmem_capacity_bytes", None)
        if cap:
            return int(min(max(int(cap), 32 * 1024 * 1024), 128 * 1024 * 1024))
    except Exception:
        pass
    return 64 * 1024 * 1024      # conservative fallback (v7x per-TC VMEM)


def positional_encoder_forward(x, pe, d_model, *, donate_x=False):
    """x: (S, B, d_model) time-major; pe: (max_seq_len, 1, d_model) buffer."""
    S, B, D = x.shape
    assert D == d_model
    BD = B * D

    # Lane-merged 2-D presentation: rows = sequence (dense sublanes), lanes = B*D.
    x2 = x.reshape(S, BD)
    # Full pe passed (no [:S] slice -> no extra HBM materialization); the index_map
    # only ever touches the first ceil(S/ts)*ts rows.  Cast to x's dtype.
    pe2 = pe.reshape(pe.shape[0], D).astype(x.dtype)

    # ---- VMEM-budget-driven tile rows (per TPU generation) -------------------
    itemsize = jnp.dtype(x.dtype).itemsize
    cap = _vmem_capacity_bytes()             # 64 MiB (v7x) / 128 MiB (v5e, v6e)
    budget = int(cap * 0.6)                  # headroom below the raised scoped limit
    # 2x double-buffered x-in + 2x double-buffered out + ~1 tile of in-kernel
    # temporaries + 2x double-buffered pe.
    bytes_per_row = 5 * BD * itemsize + 2 * D * itemsize
    ts = min(budget // bytes_per_row, S)
    ts = max(8, (ts // 8) * 8)               # sublane multiple (>= 8)
    if S >= 16:
        # Keep >= 2 grid steps so the "parallel" axis can shard across v7x's 2 TCs.
        ts = min(ts, ((((S + 1) // 2) + 7) // 8) * 8)
    grid = (pl.cdiv(S, ts),)                 # ragged tail handled by masked OOB writes

    kernel = functools.partial(_posenc_kernel, scale=math.sqrt(d_model), batch=B)
    out2 = pl.pallas_call(
        kernel,
        out_shape=jax.ShapeDtypeStruct((S, BD), x.dtype),
        grid_spec=pltpu.PrefetchScalarGridSpec(
            num_scalar_prefetch=0,
            grid=grid,
            in_specs=[
                pl.BlockSpec((ts, BD), lambda s: (s, 0)),   # x tile (full lane extent)
                pl.BlockSpec((ts, D), lambda s: (s, 0)),    # pe tile (first S rows only)
            ],
            out_specs=pl.BlockSpec((ts, BD), lambda s: (s, 0)),
        ),
        compiler_params=pltpu.CompilerParams(
            dimension_semantics=("parallel",),              # only a lever on v7x (2 TCs)
            vmem_limit_bytes=int(cap * 0.75),               # raise 16/32 MiB scoped default
        ),
        input_output_aliases={0: 0} if donate_x else {},    # optional x-buffer reuse
    )(x2, pe2)
    return out2.reshape(S, B, D)


# ----------------------------------------------------------------------------
# Demo / self-check
# ----------------------------------------------------------------------------
if __name__ == "__main__":
    d_model = 32
    max_seq_len = 30
    seq = 8       # x.size(0)
    batch = 2

    key = jax.random.PRNGKey(0)
    x = jax.random.normal(key, (seq, batch, d_model), dtype=jnp.float32)

    pe = build_pe(max_seq_len, d_model)

    out = positional_encoder_forward(x, pe, d_model)
    out = jax.block_until_ready(out)

    # Pure-JAX reference of the same (bug-faithful) math.
    ref = x * math.sqrt(d_model) + pe[:seq]
    assert out.shape == (seq, batch, d_model)
    assert jnp.allclose(out, ref, atol=1e-6, rtol=1e-6)

    print("KERNEL_OK")
</pallas_src>

<mosaic_0001>
module attributes {stable_mosaic.version = 11 : i64} {
  func.func @_posenc_kernel(%arg0: i32, %arg1: memref<8x64xf32, #tpu.memory_space<vmem>>, %arg2: memref<8x32xf32, #tpu.memory_space<vmem>>, %arg3: memref<8x64xf32, #tpu.memory_space<vmem>>) attributes {dimension_semantics = [#tpu.dimension_semantics<parallel>], iteration_bounds = array<i64: 1>, scalar_prefetch = 0 : i64, scratch_operands = 0 : i64, tpu.core_type = #tpu.core_type<tc>, window_params = [{transform_indices = @transform_0, window_bounds = array<i64: 8, 64>}, {transform_indices = @transform_1, window_bounds = array<i64: 8, 32>}, {transform_indices = @transform_2, window_bounds = array<i64: 8, 64>}]} {
    %c0 = arith.constant 0 : index
    %c0_0 = arith.constant 0 : index
    %0 = vector.load %arg2[%c0, %c0_0] : memref<8x32xf32, #tpu.memory_space<vmem>>, vector<8x32xf32>
    %1 = tpu.concatenate %0, %0 in 1 : vector<8x32xf32>, vector<8x32xf32> -> vector<8x64xf32>
    %c0_1 = arith.constant 0 : index
    %c0_2 = arith.constant 0 : index
    %2 = vector.load %arg1[%c0_1, %c0_2] : memref<8x64xf32, #tpu.memory_space<vmem>>, vector<8x64xf32>
    %cst = arith.constant 5.65685415 : f32
    %3 = vector.broadcast %cst : f32 to vector<8x64xf32>
    %4 = arith.mulf %2, %3 : vector<8x64xf32>
    %5 = arith.addf %4, %1 : vector<8x64xf32>
    %c0_3 = arith.constant 0 : index
    %c0_4 = arith.constant 0 : index
    %6 = vector.load %arg3[%c0_3, %c0_4] : memref<8x64xf32, #tpu.memory_space<vmem>>, vector<8x64xf32>
    tpu.vector_store %arg3[%c0_3, %c0_4], %5 {strides = array<i32>} : memref<8x64xf32, #tpu.memory_space<vmem>>, vector<8x64xf32>,
    return
  }
  func.func @transform_0(%arg0: i32) -> (i32, i32) {
    %c0_i32 = arith.constant 0 : i32
    %c0_i32_0 = arith.constant 0 : i32
    return %arg0, %c0_i32 : i32, i32
  }
  func.func @transform_1(%arg0: i32) -> (i32, i32) {
    %c0_i32 = arith.constant 0 : i32
    %c0_i32_0 = arith.constant 0 : i32
    return %arg0, %c0_i32 : i32, i32
  }
  func.func @transform_2(%arg0: i32) -> (i32, i32) {
    %c0_i32 = arith.constant 0 : i32
    %c0_i32_0 = arith.constant 0 : i32
    return %arg0, %c0_i32 : i32, i32
  }
}

</mosaic_0001>

<llo_original>
// kernel: tpu_custom_call.1
$region0: #{tpu_custom_call.1}
  #allocation0 [shape = 'u32[]', space=smem, size = 0x4, offset = 0x4, fixed_abs, tag = 'smem constant byte address 0x4 - core index']
  #allocation1 [shape = 'u32[144,128]{1,0:T(1,128)}', space=vmem, size = 0x12000, scoped, tag = 'internal scratch']
  %s0 = inlined_call_operand.hbm [shape: f32[8,64], index: 0, kind: input, shape index: {}]
  %s1 = inlined_call_operand.hbm [shape: f32[30,32], index: 1, kind: input, shape index: {}]
  %s2 = inlined_call_operand.hbm [shape: f32[8,64], index: 2, kind: output, shape index: {}]
  %s3 = sld [smem:[#allocation0]]
  $region26: #{tpu_custom_call.1} parent=0
    _
  %s5 = ssub.s32 1, %s3
  %s6 = scalar_select 0, %s5, %s3
  $region1: #{tpu_custom_call.1} parent=0
    #allocation2 [shape = 'u8[4096]{0}', space=vmem, size = 0x1000, scoped, tag = 'input window, operand 0, single buffered']
    #allocation3 [shape = 's32[1]{0}', space=sflag, size = 0x4, scoped, tag = 'scoped memory for tpu_custom_call.1']
    #allocation4 [shape = 's32[1]{0}', space=sflag, size = 0x4, scoped, tag = 'scoped memory for tpu_custom_call.1']
    #allocation5 [shape = 'u8[4096]{0}', space=vmem, size = 0x1000, scoped, tag = 'input window, operand 1, single buffered']
    #allocation6 [shape = 's32[1]{0}', space=sflag, size = 0x4, scoped, tag = 'scoped memory for tpu_custom_call.1']
    #allocation7 [shape = 'u8[4096]{0}', space=vmem, size = 0x1000, scoped, tag = 'output window, operand 0, single buffered']
    %7 = vsyncpa [#allocation3], 0
    %8 = vsyncpa [#allocation6], 0
    %9 = vsyncpa [#allocation4], 0
    // Predicated region
    $region2: #{tpu_custom_call.1} parent=1 // pred_check
      _
    $region3: #{tpu_custom_call.1} parent=1 // pred_check_branch
      %11 = sbr.rel (0) target = $region5
    $region4: #{tpu_custom_call.1} parent=1 // pred_region
      %s13 = ssub.s32 128, 128
      %14 = vsyncadd [#allocation3], %s13
      %s16 = sshll.u32 [#allocation2], 4
      %s17 = int_to_ptr.vmem [resolvable:$true] %s16
      %19 = dma.hbm_to_vmem [thread:$0]  %s0, 128, %s17, [#allocation3]
    $region5: #{tpu_custom_call.1} parent=1 // pred_fallthru
      _
    // Predicated region
    $region6: #{tpu_custom_call.1} parent=1 // pred_check
      _
    $region7: #{tpu_custom_call.1} parent=1 // pred_check_branch
      %21 = sbr.rel (0) target = $region9
    $region8: #{tpu_custom_call.1} parent=1 // pred_region
      %s23 = ssub.s32 128, 128
      %24 = vsyncadd [#allocation6], %s23
      %s26 = sshll.u32 [#allocation5], 4
      %s27 = int_to_ptr.vmem [resolvable:$true] %s26
      %29 = dma.hbm_to_vmem [thread:$0]  %s1, 128, %s27, [#allocation6]
    $region9: #{tpu_custom_call.1} parent=1 // pred_fallthru
      _
    // Predicated region
    $region10: #{tpu_custom_call.1} parent=1 // pred_check
      _
    $region11: #{tpu_custom_call.1} parent=1 // pred_check_branch
      %31 = sbr.rel (0) target = $region13
    $region12: #{tpu_custom_call.1} parent=1 // pred_region
      %32 = dma.done [#allocation3], 128
    $region13: #{tpu_custom_call.1} parent=1 // pred_fallthru
      _
    // Predicated region
    $region14: #{tpu_custom_call.1} parent=1 // pred_check
      _
    $region15: #{tpu_custom_call.1} parent=1 // pred_check_branch
      %34 = sbr.rel (0) target = $region17
    $region16: #{tpu_custom_call.1} parent=1 // pred_region
      %35 = dma.done [#allocation6], 128
    $region17: #{tpu_custom_call.1} parent=1 // pred_fallthru
      _
    %v36 = vld [vmem:[#allocation5] sm:$0xff]
    %38 = vrot.lane.b32.xlu0 %v36, 32
    %v39 = vpop.permute.xlu0 %38
    %vm41 = vcmask 261120
    %v42 = vsel %vm41, %v36, %v39
    %v43 = vld [vmem:[#allocation2] sm:$0xff]
    %v44 = vmul.f32 %v43, 5.656854
    %v45 = vadd.f32 %v44, %v42
    %vm46 = vcmask 523264
    %47 = vst.msk [vmem:[#allocation7] sm:$0xff] %vm46, %v45
    // Predicated region
    $region18: #{tpu_custom_call.1} parent=1 // pred_check
      _
    $region19: #{tpu_custom_call.1} parent=1 // pred_check_branch
      %49 = sbr.rel (0) target = $region21
    $region20: #{tpu_custom_call.1} parent=1 // pred_region
      %s51 = ssub.s32 128, 128
      %52 = vsyncadd [#allocation4], %s51
      %s54 = sshll.u32 [#allocation7], 4
      %s55 = int_to_ptr.vmem [resolvable:$true] %s54
      %57 = dma.vmem_to_hbm [thread:$0]  %s55, 128, %s2, [#allocation4]
    $region21: #{tpu_custom_call.1} parent=1 // pred_fallthru
      _
    // Predicated region
    $region22: #{tpu_custom_call.1} parent=1 // pred_check
      _
    $region23: #{tpu_custom_call.1} parent=1 // pred_check_branch
      %59 = sbr.rel (0) target = $region25
    $region24: #{tpu_custom_call.1} parent=1 // pred_region
      %60 = dma.done [#allocation4], 128
    $region25: #{tpu_custom_call.1} parent=1 // pred_fallthru
      _
    %61 = vsyncpa [#allocation3], 1
    %62 = vsyncpa [#allocation6], 1
    %63 = vsyncpa [#allocation4], 1

</llo_original>
